<compile_context>
chip_gen: v7x
topology: tpu7x:2x2x1
jax: 0.10.0
libtpu: 0.0.40
codegen_flags: <defaults>
</compile_context>

<pallas_src>
import functools
import math

import jax
import jax.numpy as jnp
from jax.experimental import pallas as pl
from jax.experimental.pallas import tpu as pltpu

EPS = 1e-8
LOG2 = math.log(2.0)

_LANE = 128
_SUB = 8
_MAX_LANES = 16384                     # cap on the lane width of a 2-D view
_VMEM_BUDGET = 16 * 1024 * 1024        # double-buffered (in+out) block budget
_VMEM_LIMIT = 32 * 1024 * 1024         # scoped-VMEM limit handed to Mosaic


def _ssp(x):
    """shifted softplus: softplus(x) - log(2)."""
    return jnp.logaddexp(x, 0.0) - LOG2


def _round_up(x, m):
    return ((x + m - 1) // m) * m


def _pick_lane_width(total, unit):
    """Lane width L for a copy-free 2-D view [total/L, L].

    L must be a multiple of `unit` (so m-groups / the C*m channel pattern never
    straddle a lane row) and a divisor of `total` (so the reshape is free, no
    pad).  Scores lane/sublane utilization, preferring views with enough rows
    to split the grid.
    """
    best_key, best_l = None, unit
    for g in range(1, max(1, _MAX_LANES // unit) + 1):
        l = g * unit
        if total % l:
            continue
        r = total // l
        lane_util = l / _round_up(l, _LANE)
        sub_util = min(r, _SUB) / _SUB
        key = (round(lane_util * sub_util, 6), min(r, 32), l)
        if best_key is None or key > best_key:
            best_key, best_l = key, l
    return best_l


def _row_tile(rows, lanes):
    """Row-block: big enough to amortize the ~0.35us/step cost, small enough to
    fit the VMEM budget and keep >=2 grid steps (v7x has 2 TensorCores)."""
    if rows <= _SUB:
        return rows                                        # full extent
    lane_pad = _round_up(lanes, _LANE)
    budget = max(_SUB, _VMEM_BUDGET // (16 * lane_pad))    # 2 bufs * (in+out) * 4B
    half = _round_up(pl.cdiv(rows, 2), _SUB)
    tr = min(budget, half)
    return max(_SUB, (tr // _SUB) * _SUB)


def _compiler_params():
    return pltpu.CompilerParams(
        dimension_semantics=("parallel",),
        vmem_limit_bytes=_VMEM_LIMIT)


# ----------------------------- rank-0 kernel -------------------------------
def _rank0_kernel(x_ref, o_ref):
    o_ref[...] = _ssp(x_ref[...])


def rank0_nonlin(x):
    """Elementwise shifted softplus (l=0 / scalar features), any shape.

    Runs on a copy-free [R, L] view; remainder blocks are handled by the
    pipeline (no jnp.pad / slice round-trips through HBM).
    """
    shape = x.shape
    total = x.size
    lanes = _pick_lane_width(total, 1)
    rows = total // lanes
    tr = _row_tile(rows, lanes)
    # TODO(synk): on v7x (~3.2 TB/s) the 2 EUP ops/element of softplus can make
    # this kernel EUP-bound; a bf16 transcendental path would relieve it.
    y = pl.pallas_call(
        _rank0_kernel,
        out_shape=jax.ShapeDtypeStruct((rows, lanes), x.dtype),
        grid_spec=pltpu.PrefetchScalarGridSpec(
            num_scalar_prefetch=0,
            grid=(pl.cdiv(rows, tr),),
            in_specs=[pl.BlockSpec((tr, lanes), lambda i: (i, 0))],
            out_specs=pl.BlockSpec((tr, lanes), lambda i: (i, 0)),
        ),
        compiler_params=_compiler_params(),
    )(x.reshape(rows, lanes))
    return y.reshape(shape)


# ----------------------------- rank>0 kernel -------------------------------
def _rank1_kernel(x_ref, b_ref, p_ref, o_ref, *, m):
    # x_ref/o_ref: (tr, L) natural-layout block, L = g*C*m lanes.
    # b_ref: (1, L) per-lane bias (bias[channel of lane]), broadcasts over rows.
    # p_ref: (1, L) int32 position-within-group (lane % m).
    x = x_ref[...]
    sq = x * x
    pos = p_ref[...]
    # Per-group sum of squares, replicated onto every lane of its group, built
    # from masked lane-rolls: exact f32 arithmetic, no transposes, and the
    # roll/select work rides on slots that are idle in this HBM-bound kernel.
    s = sq
    for d in range(1, m):
        s = s + jnp.where(pos + d < m, jnp.roll(sq, -d, axis=1), 0.0)
        s = s + jnp.where(pos - d >= 0, jnp.roll(sq, d, axis=1), 0.0)
    norm = jnp.sqrt(s + EPS)
    factor = _ssp(norm + b_ref[...]) / norm
    o_ref[...] = x * factor


def rank1_nonlin(x, bias):
    """Rotation-equivariant nonlinearity for l>0 features.

    x: [B, N, C, m] (m = 2l+1), bias: [C].  The kernel runs on a copy-free
    [R, L] view of x (L = g*C*m, one lane row holds g whole points), so there
    are no wrapper transposes and no padding copies.
    """
    B, N, C, m = x.shape
    M, K = B * N, C * m
    lanes = _pick_lane_width(M * K, K)
    rows = (M * K) // lanes
    tr = _row_tile(rows, lanes)

    lane_idx = jnp.arange(lanes, dtype=jnp.int32)
    bias_lanes = bias[(lane_idx % K) // m].reshape(1, lanes).astype(x.dtype)
    pos_lanes = (lane_idx % m).reshape(1, lanes)

    y = pl.pallas_call(
        functools.partial(_rank1_kernel, m=m),
        out_shape=jax.ShapeDtypeStruct((rows, lanes), x.dtype),
        grid_spec=pltpu.PrefetchScalarGridSpec(
            num_scalar_prefetch=0,
            grid=(pl.cdiv(rows, tr),),
            in_specs=[
                pl.BlockSpec((tr, lanes), lambda i: (i, 0)),
                pl.BlockSpec((1, lanes), lambda i: (0, 0)),
                pl.BlockSpec((1, lanes), lambda i: (0, 0)),
            ],
            out_specs=pl.BlockSpec((tr, lanes), lambda i: (i, 0)),
        ),
        compiler_params=_compiler_params(),
    )(x.reshape(rows, lanes), bias_lanes, pos_lanes)
    return y.reshape(B, N, C, m)


# ----------------------------- module wrapper -------------------------------
class Nonlinearity:
    """JAX/Pallas port of tfn.layers.Nonlinearity (forward only).

    As in the PyTorch module, a bias parameter exists for every rank but is
    only used for ranks with 2l+1 > 1 (RotEquiv_Nonlin.forward applies the
    plain nonlinearity, without bias, to scalar channels).
    """

    def __init__(self, channels):
        self.ranks = list(channels.keys())
        self.channels = dict(channels)
        # b_init defaults to zeros_ in the PyTorch module.
        self.biases = {k: jnp.zeros((v,), jnp.float32) for k, v in channels.items()}

    def __call__(self, in_dict, rbf=None, rij=None):
        out_dict = {}
        for rank in self.ranks:
            x = in_dict[rank]                              # [B, N, C, 2l+1]
            if x.shape[-1] == 1:
                out_dict[rank] = rank0_nonlin(x)
            else:
                out_dict[rank] = rank1_nonlin(x, self.biases[rank])
        return (out_dict, rbf, rij)


# ----------------------------- reference (plain JAX) ------------------------
def _reference(in_dict, biases):
    out = {}
    for rank, x in in_dict.items():
        if x.shape[-1] == 1:
            out[rank] = _ssp(x)
        else:
            norm = jnp.sqrt(jnp.sum(x * x, axis=-1) + EPS)
            factor = _ssp(norm + biases[rank]) / norm
            out[rank] = x * factor[..., None]
    return out


if __name__ == "__main__":
    key = jax.random.PRNGKey(0)

    # Primary small test: B=2, N=7 points; scalar (m=1), l=1 (m=3) and l=2
    # (m=5) feature blocks with non-aligned M and C to exercise the copy-free
    # views, lane-roll reduction and boundary handling.
    B, N = 2, 7
    channels = {0: 4, 1: 6, 2: 4}
    k0, k1, k2, kb1, kb2 = jax.random.split(key, 5)
    in_dict = {
        0: jax.random.normal(k0, (B, N, channels[0], 1), jnp.float32),
        1: jax.random.normal(k1, (B, N, channels[1], 3), jnp.float32),
        2: jax.random.normal(k2, (B, N, channels[2], 5), jnp.float32),
    }
    layer = Nonlinearity(channels)
    # Default biases are zeros (as in PyTorch); use non-zero ones so the
    # per-channel lane-bias path is actually exercised.
    layer.biases[1] = 0.1 * jax.random.normal(kb1, (channels[1],), jnp.float32)
    layer.biases[2] = 0.1 * jax.random.normal(kb2, (channels[2],), jnp.float32)

    out_dict, rbf, rij = layer(in_dict)
    jax.block_until_ready(out_dict)
    ref = _reference(in_dict, layer.biases)
    for rank in layer.ranks:
        assert jnp.allclose(out_dict[rank], ref[rank], atol=1e-5, rtol=1e-5), rank

    # Secondary test: larger M so both kernels take multiple grid steps and the
    # rank-1 grid has a partially-valid boundary block (no padding copies).
    B2, N2, C2 = 1, 5000, 4
    k3, k4 = jax.random.split(jax.random.PRNGKey(1))
    in_dict2 = {
        0: jax.random.normal(k3, (B2, N2, C2, 1), jnp.float32),
        1: jax.random.normal(k4, (B2, N2, C2, 3), jnp.float32),
    }
    layer2 = Nonlinearity({0: C2, 1: C2})
    out2, _, _ = layer2(in_dict2)
    jax.block_until_ready(out2)
    ref2 = _reference(in_dict2, layer2.biases)
    for rank in layer2.ranks:
        assert jnp.allclose(out2[rank], ref2[rank], atol=1e-5, rtol=1e-5), rank

    print("KERNEL_OK")
</pallas_src>

<mosaic_0001>
module attributes {stable_mosaic.version = 11 : i64} {
  func.func @_rank0_kernel(%arg0: i32, %arg1: memref<8x7xf32, #tpu.memory_space<vmem>>, %arg2: memref<8x7xf32, #tpu.memory_space<vmem>>) attributes {dimension_semantics = [#tpu.dimension_semantics<parallel>], iteration_bounds = array<i64: 1>, scalar_prefetch = 0 : i64, scratch_operands = 0 : i64, tpu.core_type = #tpu.core_type<tc>, window_params = [{transform_indices = @transform_0, window_bounds = array<i64: 8, 7>}, {transform_indices = @transform_1, window_bounds = array<i64: 8, 7>}]} {
    %c0 = arith.constant 0 : index
    %c0_0 = arith.constant 0 : index
    %0 = vector.load %arg1[%c0, %c0_0] : memref<8x7xf32, #tpu.memory_space<vmem>>, vector<8x7xf32>
    %cst = arith.constant 0.000000e+00 : f32
    %1 = vector.broadcast %cst : f32 to vector<8x7xf32>
    %2 = arith.maximumf %0, %1 : vector<8x7xf32>
    %3 = vector.broadcast %cst : f32 to vector<8x7xf32>
    %4 = arith.subf %0, %3 : vector<8x7xf32>
    %5 = arith.cmpf one, %4, %4 : vector<8x7xf32>
    %6 = vector.broadcast %cst : f32 to vector<8x7xf32>
    %7 = arith.addf %0, %6 : vector<8x7xf32>
    %8 = math.absf %4 : vector<8x7xf32>
    %cst_1 = arith.constant 0.000000e+00 : f32
    %9 = vector.broadcast %cst_1 : f32 to vector<8x7xf32>
    %10 = arith.subf %9, %8 : vector<8x7xf32>
    %11 = math.exp %10 : vector<8x7xf32>
    %12 = math.log1p %11 : vector<8x7xf32>
    %13 = arith.addf %2, %12 : vector<8x7xf32>
    %14 = arith.select %5, %7, %13 : vector<8x7xi1>, vector<8x7xf32>
    %cst_2 = arith.constant 0.693147182 : f32
    %15 = vector.broadcast %cst_2 : f32 to vector<8x7xf32>
    %16 = arith.subf %14, %15 : vector<8x7xf32>
    %c0_3 = arith.constant 0 : index
    %c0_4 = arith.constant 0 : index
    %17 = vector.load %arg2[%c0_3, %c0_4] : memref<8x7xf32, #tpu.memory_space<vmem>>, vector<8x7xf32>
    tpu.vector_store %arg2[%c0_3, %c0_4], %16 {strides = array<i32>} : memref<8x7xf32, #tpu.memory_space<vmem>>, vector<8x7xf32>,
    return
  }
  func.func @transform_0(%arg0: i32) -> (i32, i32) {
    %c0_i32 = arith.constant 0 : i32
    %c0_i32_0 = arith.constant 0 : i32
    return %arg0, %c0_i32 : i32, i32
  }
  func.func @transform_1(%arg0: i32) -> (i32, i32) {
    %c0_i32 = arith.constant 0 : i32
    %c0_i32_0 = arith.constant 0 : i32
    return %arg0, %c0_i32 : i32, i32
  }
}

</mosaic_0001>

<llo_original>
// kernel: tpu_custom_call.1
$region0: #{tpu_custom_call.1}
  #allocation0 [shape = 'u32[]', space=smem, size = 0x4, offset = 0x4, fixed_abs, tag = 'smem constant byte address 0x4 - core index']
  #allocation1 [shape = 'u32[144,128]{1,0:T(1,128)}', space=vmem, size = 0x12000, scoped, tag = 'internal scratch']
  %s0 = inlined_call_operand.hbm [shape: f32[8,7], index: 0, kind: input, shape index: {}]
  %s1 = inlined_call_operand.hbm [shape: f32[8,7], index: 1, kind: output, shape index: {}]
  %s2 = sld [smem:[#allocation0]]
  $region18: #{tpu_custom_call.1} parent=0
    _
  %s4 = ssub.s32 1, %s2
  %s5 = scalar_select 0, %s4, %s2
  $region1: #{tpu_custom_call.1} parent=0
    #allocation2 [shape = 'u8[4096]{0}', space=vmem, size = 0x1000, scoped, tag = 'input window, operand 0, single buffered']
    #allocation3 [shape = 's32[1]{0}', space=sflag, size = 0x4, scoped, tag = 'scoped memory for tpu_custom_call.1']
    #allocation4 [shape = 's32[1]{0}', space=sflag, size = 0x4, scoped, tag = 'scoped memory for tpu_custom_call.1']
    #allocation5 [shape = 'u8[4096]{0}', space=vmem, size = 0x1000, scoped, tag = 'output window, operand 0, single buffered']
    %6 = vsyncpa [#allocation3], 0
    %7 = vsyncpa [#allocation4], 0
    // Predicated region
    $region2: #{tpu_custom_call.1} parent=1 // pred_check
      _
    $region3: #{tpu_custom_call.1} parent=1 // pred_check_branch
      %9 = sbr.rel (0) target = $region5
    $region4: #{tpu_custom_call.1} parent=1 // pred_region
      %s11 = ssub.s32 128, 128
      %12 = vsyncadd [#allocation3], %s11
      %s14 = sshll.u32 [#allocation2], 4
      %s15 = int_to_ptr.vmem [resolvable:$true] %s14
      %17 = dma.hbm_to_vmem [thread:$0]  %s0, 128, %s15, [#allocation3]
    $region5: #{tpu_custom_call.1} parent=1 // pred_fallthru
      _
    // Predicated region
    $region6: #{tpu_custom_call.1} parent=1 // pred_check
      _
    $region7: #{tpu_custom_call.1} parent=1 // pred_check_branch
      %19 = sbr.rel (0) target = $region9
    $region8: #{tpu_custom_call.1} parent=1 // pred_region
      %20 = dma.done [#allocation3], 128
    $region9: #{tpu_custom_call.1} parent=1 // pred_fallthru
      _
    %v21 = vld [vmem:[#allocation2] sm:$0xff]
    %v22 = vmax.f32 %v21, 0.0
    %vm23 = vcmp.ne.f32.partialorder %v21, %v21
    %v24 = vadd.f32 %v21, 0.0
    %v25 = vand.u32 2147483647, %v21
    %v26 = vsub.f32 0.0, %v25
    %v27 = vmul.f32 %v26, 1.442695
    %v28 = vpow.pop %v27
    %v29 = vadd.f32 %v28, 1.0
    %v30 = vlog2.pop %v29
    %v31 = vmul.f32 %v30, 0.6931472
    %v32 = vmul.f32 -0.5, %v28
    %v33 = vadd.f32 %v32, 1.0
    %v34 = vmul.f32 %v33, %v28
    %v35 = vand.u32 2147483647, %v28
    %vm36 = vcmp.lt.f32.partialorder %v35, 0.0004427343
    %v37 = vsel %vm36, %v34, %v31
    %v38 = vadd.f32 %v22, %v37
    %v39 = vsel %vm23, %v24, %v38
    %v40 = vsub.f32 %v39, 0.6931472
    %vm41 = vcmask 56320
    %42 = vst.msk [vmem:[#allocation5] sm:$0xff] %vm41, %v40
    // Predicated region
    $region10: #{tpu_custom_call.1} parent=1 // pred_check
      _
    $region11: #{tpu_custom_call.1} parent=1 // pred_check_branch
      %44 = sbr.rel (0) target = $region13
    $region12: #{tpu_custom_call.1} parent=1 // pred_region
      %s46 = ssub.s32 128, 128
      %47 = vsyncadd [#allocation4], %s46
      %s49 = sshll.u32 [#allocation5], 4
      %s50 = int_to_ptr.vmem [resolvable:$true] %s49
      %52 = dma.vmem_to_hbm [thread:$0]  %s50, 128, %s1, [#allocation4]
    $region13: #{tpu_custom_call.1} parent=1 // pred_fallthru
      _
    // Predicated region
    $region14: #{tpu_custom_call.1} parent=1 // pred_check
      _
    $region15: #{tpu_custom_call.1} parent=1 // pred_check_branch
      %54 = sbr.rel (0) target = $region17
    $region16: #{tpu_custom_call.1} parent=1 // pred_region
      %55 = dma.done [#allocation4], 128
    $region17: #{tpu_custom_call.1} parent=1 // pred_fallthru
      _
    %56 = vsyncpa [#allocation3], 1
    %57 = vsyncpa [#allocation4], 1

</llo_original>
